<compile_context>
chip_gen: v7x
topology: tpu7x:2x2x1
jax: 0.10.0
libtpu: 0.0.40
codegen_flags: <defaults>
</compile_context>

<pallas_src>
import jax
import jax.numpy as jnp
from jax.experimental import pallas as pl
from jax.experimental.pallas import tpu as pltpu

_LANE = 128      # f32 lane width of a vreg
_SUBLANE = 8     # f32 sublane count of a vreg
_MAX_TB = 1024   # max batch-tile rows per grid step
_SPLIT_MIN = 512  # batches >= this get >= 2 tiles so v7x's 2 TCs both get work


def _round_up(n, m):
    return ((n + m - 1) // m) * m


def _mlp_kernel(x_ref, w1_ref, b1_ref, w2_ref, b2_ref, o_ref):
    # x_ref:  (tb, S)       w1_ref: (S, H_pad)    b1_ref: (1, H_pad)
    # w2_ref: (H_pad, A)    b2_ref: (1, A)        o_ref:  (tb, A)
    h = jnp.dot(x_ref[...], w1_ref[...],
                preferred_element_type=jnp.float32) + b1_ref[...]
    h = jnp.maximum(h, 0.0)  # ReLU (padded hidden units are exactly 0)
    o = jnp.dot(h, w2_ref[...], preferred_element_type=jnp.float32) + b2_ref[...]
    o_ref[...] = o.astype(o_ref.dtype)


def init_params(key, state_size=9, hidden_size=100, action_size=9):
    """Deterministic init mimicking torch.nn.Linear default (U[-1/sqrt(fan_in), +])."""
    k1, k2, k3, k4 = jax.random.split(key, 4)
    bound1 = 1.0 / jnp.sqrt(jnp.float32(state_size))
    bound2 = 1.0 / jnp.sqrt(jnp.float32(hidden_size))
    w1 = jax.random.uniform(k1, (state_size, hidden_size), jnp.float32, -bound1, bound1)
    b1 = jax.random.uniform(k2, (hidden_size,), jnp.float32, -bound1, bound1)
    w2 = jax.random.uniform(k3, (hidden_size, action_size), jnp.float32, -bound2, bound2)
    b2 = jax.random.uniform(k4, (action_size,), jnp.float32, -bound2, bound2)
    return w1, b1, w2, b2


def pad_params(w1, b1, w2, b2):
    """One-time padding: only the *hidden* dim is lane-padded (100 -> 128).

    state/action dims stay at their true sizes (block dims equal to the full
    array dim are legal), so there is no input padding slab and no output
    write amplification.  Zero padding keeps the math identical: ReLU(0)=0 and
    the zero rows of w2 contribute nothing.
    """
    S, H = w1.shape
    _, A = w2.shape
    H_pad = _round_up(H, _LANE)
    w1p = jnp.zeros((S, H_pad), jnp.float32).at[:, :H].set(w1)
    b1p = jnp.zeros((1, H_pad), jnp.float32).at[0, :H].set(b1)
    w2p = jnp.zeros((H_pad, A), jnp.float32).at[:H, :].set(w2)
    b2p = jnp.reshape(b2.astype(jnp.float32), (1, A))
    return w1p, b1p, w2p, b2p


def _batch_tiling(B):
    """Returns (tb, nb, B_pad).

    Small batches: one grid step whose block equals the full batch dim
    (no padding at all, legal regardless of divisibility).  Large batches:
    >= 2 sublane-aligned tiles with minimal over-padding so the 'parallel'
    grid axis spans both v7x TensorCores.
    """
    B8 = _round_up(B, _SUBLANE)
    if B8 < _SPLIT_MIN:
        return B, 1, B
    nb = max(2, pl.cdiv(B8, _MAX_TB))
    tb = _round_up(pl.cdiv(B8, nb), _SUBLANE)
    return tb, nb, nb * tb


@jax.jit
def dqn_forward(x, w1p, b1p, w2p, b2p):
    """x: (B, state_size) or (state_size,) f32 -> (B, action_size) / (action_size,)."""
    squeeze = (x.ndim == 1)
    if squeeze:
        x = x[None, :]
    x = x.astype(jnp.float32)

    B, S = x.shape
    _, H_pad = w1p.shape
    A = w2p.shape[1]

    tb, nb, B_pad = _batch_tiling(B)
    xp = x if B_pad == B else jnp.pad(x, ((0, B_pad - B), (0, 0)))

    flops = 2 * B_pad * (S * H_pad + H_pad * A)
    bytes_accessed = 4 * (B_pad * S + B_pad * A
                          + S * H_pad + H_pad + H_pad * A + A)

    out = pl.pallas_call(
        _mlp_kernel,
        out_shape=jax.ShapeDtypeStruct((B_pad, A), jnp.float32),
        grid=(nb,),
        in_specs=[
            pl.BlockSpec((tb, S), lambda i: (i, 0)),       # x: tiled over batch
            pl.BlockSpec((S, H_pad), lambda i: (0, 0)),    # w1: VMEM-resident
            pl.BlockSpec((1, H_pad), lambda i: (0, 0)),    # b1: VMEM-resident
            pl.BlockSpec((H_pad, A), lambda i: (0, 0)),    # w2: VMEM-resident
            pl.BlockSpec((1, A), lambda i: (0, 0)),        # b2: VMEM-resident
        ],
        out_specs=pl.BlockSpec((tb, A), lambda i: (i, 0)), # no lane padding on output
        compiler_params=pltpu.CompilerParams(
            dimension_semantics=("parallel",),   # shards batch tiles across v7x's 2 TCs
            vmem_limit_bytes=32 * 1024 * 1024,   # generous; real footprint is a few MiB
        ),
        cost_estimate=pl.CostEstimate(
            flops=flops, transcendentals=0, bytes_accessed=bytes_accessed),
    )(xp, w1p, b1p, w2p, b2p)

    out = out if B_pad == B else out[:B]
    return out[0] if squeeze else out


if __name__ == "__main__":
    state_size, hidden_size, action_size = 9, 100, 9

    key = jax.random.PRNGKey(0)
    kx1, kx2, kx3, kp = jax.random.split(key, 4)
    w1, b1, w2, b2 = init_params(kp, state_size, hidden_size, action_size)
    w1p, b1p, w2p, b2p = pad_params(w1, b1, w2, b2)

    def ref_forward(x):
        return jnp.maximum(x @ w1 + b1, 0.0) @ w2 + b2

    # Small inference-sized batch: single grid step, zero padding, zero post-slicing.
    x_small = jax.random.normal(kx1, (2, state_size), jnp.float32)
    out_small = jax.block_until_ready(dqn_forward(x_small, w1p, b1p, w2p, b2p))
    assert out_small.shape == (2, action_size)
    assert jnp.allclose(out_small, ref_forward(x_small), atol=1e-5, rtol=1e-5)

    # Single 1-D state, as used by Model.get_action.
    x_one = jax.random.normal(kx2, (state_size,), jnp.float32)
    out_one = jax.block_until_ready(dqn_forward(x_one, w1p, b1p, w2p, b2p))
    assert out_one.shape == (action_size,)
    assert jnp.allclose(out_one, ref_forward(x_one[None, :])[0], atol=1e-5, rtol=1e-5)

    # Replay-buffer-sized batch: exercises the >=2-tile batch grid (v7x dual-TC path).
    x_big = jax.random.normal(kx3, (1024, state_size), jnp.float32)
    out_big = jax.block_until_ready(dqn_forward(x_big, w1p, b1p, w2p, b2p))
    assert out_big.shape == (1024, action_size)
    assert jnp.allclose(out_big, ref_forward(x_big), atol=1e-4, rtol=1e-4)

    print("KERNEL_OK")
</pallas_src>

<mosaic_0001>
module attributes {stable_mosaic.version = 11 : i64} {
  func.func @_mlp_kernel(%arg0: i32, %arg1: memref<2x9xf32, #tpu.memory_space<vmem>>, %arg2: memref<9x128xf32, #tpu.memory_space<vmem>>, %arg3: memref<1x128xf32, #tpu.memory_space<vmem>>, %arg4: memref<128x9xf32, #tpu.memory_space<vmem>>, %arg5: memref<1x9xf32, #tpu.memory_space<vmem>>, %arg6: memref<2x9xf32, #tpu.memory_space<vmem>>) attributes {dimension_semantics = [#tpu.dimension_semantics<parallel>], iteration_bounds = array<i64: 1>, scalar_prefetch = 0 : i64, scratch_operands = 0 : i64, tpu.core_type = #tpu.core_type<tc>, window_params = [{transform_indices = @transform_0, window_bounds = array<i64: 2, 9>}, {pipeline_mode = #tpu.pipeline_mode<synchronous>, transform_indices = @transform_1, window_bounds = array<i64: 9, 128>}, {pipeline_mode = #tpu.pipeline_mode<synchronous>, transform_indices = @transform_2, window_bounds = array<i64: 1, 128>}, {pipeline_mode = #tpu.pipeline_mode<synchronous>, transform_indices = @transform_3, window_bounds = array<i64: 128, 9>}, {pipeline_mode = #tpu.pipeline_mode<synchronous>, transform_indices = @transform_4, window_bounds = array<i64: 1, 9>}, {transform_indices = @transform_5, window_bounds = array<i64: 2, 9>}]} {
    %c0 = arith.constant 0 : index
    %c0_0 = arith.constant 0 : index
    %0 = vector.load %arg1[%c0, %c0_0] : memref<2x9xf32, #tpu.memory_space<vmem>>, vector<2x9xf32>
    %c0_1 = arith.constant 0 : index
    %c0_2 = arith.constant 0 : index
    %1 = vector.load %arg2[%c0_1, %c0_2] : memref<9x128xf32, #tpu.memory_space<vmem>>, vector<9x128xf32>
    %cst = arith.constant dense<0.000000e+00> : vector<2x128xf32>
    %2 = tpu.matmul %0, %1, %cst {dimension_numbers = #tpu.dot_dimension_numbers<[1], [0], [0], [1], [0, 0, 1, 1], [], []>} : vector<2x9xf32>, vector<9x128xf32>, vector<2x128xf32> -> vector<2x128xf32>
    %c0_3 = arith.constant 0 : index
    %c0_4 = arith.constant 0 : index
    %3 = vector.load %arg3[%c0_3, %c0_4] : memref<1x128xf32, #tpu.memory_space<vmem>>, vector<1x128xf32>
    %4 = vector.broadcast %3 : vector<1x128xf32> to vector<2x128xf32>
    %5 = arith.addf %2, %4 : vector<2x128xf32>
    %cst_5 = arith.constant 0.000000e+00 : f32
    %6 = vector.broadcast %cst_5 : f32 to vector<2x128xf32>
    %7 = arith.maximumf %5, %6 : vector<2x128xf32>
    %c0_6 = arith.constant 0 : index
    %c0_7 = arith.constant 0 : index
    %8 = vector.load %arg4[%c0_6, %c0_7] : memref<128x9xf32, #tpu.memory_space<vmem>>, vector<128x9xf32>
    %cst_8 = arith.constant dense<0.000000e+00> : vector<2x9xf32>
    %9 = tpu.matmul %7, %8, %cst_8 {dimension_numbers = #tpu.dot_dimension_numbers<[1], [0], [0], [1], [0, 0, 1, 1], [], []>} : vector<2x128xf32>, vector<128x9xf32>, vector<2x9xf32> -> vector<2x9xf32>
    %c0_9 = arith.constant 0 : index
    %c0_10 = arith.constant 0 : index
    %10 = vector.load %arg5[%c0_9, %c0_10] : memref<1x9xf32, #tpu.memory_space<vmem>>, vector<1x9xf32>
    %11 = vector.broadcast %10 : vector<1x9xf32> to vector<2x9xf32>
    %12 = arith.addf %9, %11 : vector<2x9xf32>
    %c0_11 = arith.constant 0 : index
    %c0_12 = arith.constant 0 : index
    %13 = vector.load %arg6[%c0_11, %c0_12] : memref<2x9xf32, #tpu.memory_space<vmem>>, vector<2x9xf32>
    tpu.vector_store %arg6[%c0_11, %c0_12], %12 {strides = array<i32>} : memref<2x9xf32, #tpu.memory_space<vmem>>, vector<2x9xf32>,
    return
  }
  func.func @transform_0(%arg0: i32) -> (i32, i32) {
    %c0_i32 = arith.constant 0 : i32
    %c0_i32_0 = arith.constant 0 : i32
    return %arg0, %c0_i32 : i32, i32
  }
  func.func @transform_1(%arg0: i32) -> (i32, i32) {
    %c0_i32 = arith.constant 0 : i32
    %c0_i32_0 = arith.constant 0 : i32
    %c0_i32_1 = arith.constant 0 : i32
    return %c0_i32, %c0_i32_0 : i32, i32
  }
  func.func @transform_2(%arg0: i32) -> (i32, i32) {
    %c0_i32 = arith.constant 0 : i32
    %c0_i32_0 = arith.constant 0 : i32
    %c0_i32_1 = arith.constant 0 : i32
    return %c0_i32, %c0_i32_0 : i32, i32
  }
  func.func @transform_3(%arg0: i32) -> (i32, i32) {
    %c0_i32 = arith.constant 0 : i32
    %c0_i32_0 = arith.constant 0 : i32
    %c0_i32_1 = arith.constant 0 : i32
    return %c0_i32, %c0_i32_0 : i32, i32
  }
  func.func @transform_4(%arg0: i32) -> (i32, i32) {
    %c0_i32 = arith.constant 0 : i32
    %c0_i32_0 = arith.constant 0 : i32
    %c0_i32_1 = arith.constant 0 : i32
    return %c0_i32, %c0_i32_0 : i32, i32
  }
  func.func @transform_5(%arg0: i32) -> (i32, i32) {
    %c0_i32 = arith.constant 0 : i32
    %c0_i32_0 = arith.constant 0 : i32
    return %arg0, %c0_i32 : i32, i32
  }
}

</mosaic_0001>

<llo_original>
// kernel: dqn_forward.1
$region0: #{dqn_forward.1}
  #allocation0 [shape = 'u32[]', space=smem, size = 0x4, offset = 0x4, fixed_abs, tag = 'smem constant byte address 0x4 - core index']
  #allocation1 [shape = 'u32[144,128]{1,0:T(1,128)}', space=vmem, size = 0x12000, scoped, tag = 'internal scratch']
  %s0 = inlined_call_operand.vmem [shape: f32[2,9], index: 0, kind: input, shape index: {}]
  %s1 = inlined_call_operand.vmem [shape: f32[9,128], index: 1, kind: input, shape index: {}]
  %s2 = inlined_call_operand.vmem [shape: f32[1,128], index: 2, kind: input, shape index: {}]
  %s3 = inlined_call_operand.vmem [shape: f32[128,9], index: 3, kind: input, shape index: {}]
  %s4 = inlined_call_operand.vmem [shape: f32[1,9], index: 4, kind: input, shape index: {}]
  %s5 = inlined_call_operand.hbm [shape: f32[2,9], index: 5, kind: output, shape index: {}]
  %s6 = sld [smem:[#allocation0]]
  $region30: #{dqn_forward.1} parent=0
    _
  %s8 = ssub.s32 1, %s6
  %s9 = scalar_select 0, %s8, %s6
  $region1: #{dqn_forward.1} parent=0
    #allocation2 [shape = 'u8[1024]{0}', space=vmem, size = 0x400, scoped, tag = 'output window, operand 0, single buffered']
    #allocation3 [shape = 's32[1]{0}', space=sflag, size = 0x4, scoped, tag = 'scoped memory for dqn_forward.1']
    %10 = vsyncpa [#allocation3], 0
    // Predicated region
    $region2: #{dqn_forward.1} parent=1 // pred_check
      _
    $region3: #{dqn_forward.1} parent=1 // pred_check_branch
      %12 = sbr.rel (0) target = $region5
    $region4: #{dqn_forward.1} parent=1 // pred_region
      _
    $region5: #{dqn_forward.1} parent=1 // pred_fallthru
      _
    // Predicated region
    $region6: #{dqn_forward.1} parent=1 // pred_check
      _
    $region7: #{dqn_forward.1} parent=1 // pred_check_branch
      %14 = sbr.rel (0) target = $region9
    $region8: #{dqn_forward.1} parent=1 // pred_region
      _
    $region9: #{dqn_forward.1} parent=1 // pred_fallthru
      _
    // Predicated region
    $region10: #{dqn_forward.1} parent=1 // pred_check
      _
    $region11: #{dqn_forward.1} parent=1 // pred_check_branch
      %16 = sbr.rel (0) target = $region13
    $region12: #{dqn_forward.1} parent=1 // pred_region
      _
    $region13: #{dqn_forward.1} parent=1 // pred_fallthru
      _
    // Predicated region
    $region14: #{dqn_forward.1} parent=1 // pred_check
      _
    $region15: #{dqn_forward.1} parent=1 // pred_check_branch
      %18 = sbr.rel (0) target = $region17
    $region16: #{dqn_forward.1} parent=1 // pred_region
      _
    $region17: #{dqn_forward.1} parent=1 // pred_fallthru
      _
    // Predicated region
    $region18: #{dqn_forward.1} parent=1 // pred_check
      _
    $region19: #{dqn_forward.1} parent=1 // pred_check_branch
      %20 = sbr.rel (0) target = $region21
    $region20: #{dqn_forward.1} parent=1 // pred_region
      _
    $region21: #{dqn_forward.1} parent=1 // pred_fallthru
      _
    %v21 = vld [vmem:[%s0] sm:$0x3]
    %v22 = vld [vmem:[%s1] sm:$0xff]
    %v23 = vld [vmem:[%s1 + $0x8] sm:$0x1]
    %v24 = vld [vmem:[%s2] sm:$0x1]
    %v26 = vlaneseq
    %v27 = vshrl.u32 %v26, 7
    %v28 = vsub.s32 0, %v27
    %v29 = vrot.slane %v24, %v28
    %vm31 = vcmask 72704
    %v33 = vsel %vm31, %v21, 0
    %vm35 = vcmask 1040384
    %v37 = vsel %vm35, %v23, 0
    %39 = vmatprep.subr.mxu0 0.0
    %40 = vmatpush1.msra.mxu0 %v22
    %41 = vmatprep.subr.mxu0 0.0
    %42 = vmatpush1.msra.mxu0 %v37
    %43 = vmatprep.subr.mxu0 0.0
    %44 = vmatpush1.msra.mxu0 0.0
    %45 = vmatprep.subr.mxu0 0.0
    %46 = vmatpush1.msra.mxu0 0.0
    %47 = vmatprep.subr.mxu0 0.0
    %48 = vmatpush1.msra.mxu0 0.0
    %49 = vmatprep.subr.mxu0 0.0
    %50 = vmatpush1.msra.mxu0 0.0
    %51 = vmatprep.subr.mxu0 0.0
    %52 = vmatpush1.msra.mxu0 0.0
    %53 = vmatprep.subr.mxu0 0.0
    %54 = vmatpush1.msra.mxu0 0.0
    %55 = vmatprep.subr.mxu0 0.0
    %56 = vmatpush1.msra.mxu0 0.0
    %57 = vmatprep.subr.mxu0 0.0
    %58 = vmatpush1.msra.mxu0 0.0
    %59 = vmatprep.subr.mxu0 0.0
    %60 = vmatpush1.msra.mxu0 0.0
    %61 = vmatprep.subr.mxu0 0.0
    %62 = vmatpush1.msra.mxu0 0.0
    %63 = vmatprep.subr.mxu0 0.0
    %64 = vmatpush1.msra.mxu0 0.0
    %65 = vmatprep.subr.mxu0 0.0
    %66 = vmatpush1.msra.mxu0 0.0
    %67 = vmatprep.subr.mxu0 0.0
    %68 = vmatpush1.msra.mxu0 0.0
    %69 = vmatprep.subr.mxu0 0.0
    %70 = vmatpush1.msra.mxu0 0.0
    %71 = vmatprep.subr.mxu0 0.0
    %72 = vmatpush1.msra.mxu0 0.0
    %73 = vmatprep.subr.mxu0 0.0
    %74 = vmatpush1.msra.mxu0 0.0
    %75 = vmatprep.subr.mxu0 0.0
    %76 = vmatpush1.msra.mxu0 0.0
    %77 = vmatprep.subr.mxu0 0.0
    %78 = vmatpush1.msra.mxu0 0.0
    %79 = vmatprep.subr.mxu0 0.0
    %80 = vmatpush1.msra.mxu0 0.0
    %81 = vmatprep.subr.mxu0 0.0
    %82 = vmatpush1.msra.mxu0 0.0
    %83 = vmatprep.subr.mxu0 0.0
    %84 = vmatpush1.msra.mxu0 0.0
    %85 = vmatprep.subr.mxu0 0.0
    %86 = vmatpush1.msra.mxu0 0.0
    %87 = vmatprep.subr.mxu0 0.0
    %88 = vmatpush1.msra.mxu0 0.0
    %89 = vmatprep.subr.mxu0 0.0
    %90 = vmatpush1.msra.mxu0 0.0
    %91 = vmatprep.subr.mxu0 0.0
    %92 = vmatpush1.msra.mxu0 0.0
    %93 = vmatprep.subr.mxu0 0.0
    %94 = vmatpush1.msra.mxu0 0.0
    %95 = vmatprep.subr.mxu0 0.0
    %96 = vmatpush1.msra.mxu0 0.0
    %97 = vmatprep.subr.mxu0 0.0
    %98 = vmatpush1.msra.mxu0 0.0
    %99 = vmatprep.subr.mxu0 0.0
    %100 = vmatpush1.msra.mxu0 0.0
    %101 = vmatprep.subr.mxu0 0.0
    %102 = vmatpush1.msra.mxu0 0.0
    %103 = vmatprep.mubr.f32.mxu0 0.0
    %104 = vmatmul.mubr.f32.gmra.mrb[0].mxu0 %v33
    %v105 = vpop.f32.mrb[0].mxu0
    %v106 = vadd.f32 %v29, %v105
    %v107 = vpop.f32.mrb[0].mxu0
    %108 = vdwg.mxu0
    %v109 = vmax.f32 %v106, 0.0
    %v110 = vld [vmem:[%s3] sm:$0xff]
    %v111 = vld [vmem:[%s3 + $0x8] sm:$0xff]
    %v112 = vld [vmem:[%s3 + $0x10] sm:$0xff]
    %v113 = vld [vmem:[%s3 + $0x18] sm:$0xff]
    %v114 = vld [vmem:[%s3 + $0x20] sm:$0xff]
    %v115 = vld [vmem:[%s3 + $0x28] sm:$0xff]
    %v116 = vld [vmem:[%s3 + $0x30] sm:$0xff]
    %v117 = vld [vmem:[%s3 + $0x38] sm:$0xff]
    %v118 = vld [vmem:[%s3 + $0x40] sm:$0xff]
    %v119 = vld [vmem:[%s3 + $0x48] sm:$0xff]
    %v120 = vld [vmem:[%s3 + $0x50] sm:$0xff]
    %v121 = vld [vmem:[%s3 + $0x58] sm:$0xff]
    %v122 = vld [vmem:[%s3 + $0x60] sm:$0xff]
    %v123 = vld [vmem:[%s3 + $0x68] sm:$0xff]
    %v124 = vld [vmem:[%s3 + $0x70] sm:$0xff]
    %v125 = vld [vmem:[%s3 + $0x78] sm:$0xff]
    %v126 = vld [vmem:[%s4] sm:$0x1]
    %v128 = vlaneseq
    %v129 = vshrl.u32 %v128, 7
    %v130 = vsub.s32 0, %v129
    %v131 = vrot.slane %v126, %v130
    %133 = vmatprep.subr.mxu0 0.0
    %134 = vmatpush1.msra.mxu0 %v110
    %135 = vmatprep.subr.mxu0 0.0
    %136 = vmatpush1.msra.mxu0 %v111
    %137 = vmatprep.subr.mxu0 0.0
    %138 = vmatpush1.msra.mxu0 %v112
    %139 = vmatprep.subr.mxu0 0.0
    %140 = vmatpush1.msra.mxu0 %v113
    %141 = vmatprep.subr.mxu0 0.0
    %142 = vmatpush1.msra.mxu0 %v114
    %143 = vmatprep.subr.mxu0 0.0
    %144 = vmatpush1.msra.mxu0 %v115
    %145 = vmatprep.subr.mxu0 0.0
    %146 = vmatpush1.msra.mxu0 %v116
    %147 = vmatprep.subr.mxu0 0.0
    %148 = vmatpush1.msra.mxu0 %v117
    %149 = vmatprep.subr.mxu0 0.0
    %150 = vmatpush1.msra.mxu0 %v118
    %151 = vmatprep.subr.mxu0 0.0
    %152 = vmatpush1.msra.mxu0 %v119
    %153 = vmatprep.subr.mxu0 0.0
    %154 = vmatpush1.msra.mxu0 %v120
    %155 = vmatprep.subr.mxu0 0.0
    %156 = vmatpush1.msra.mxu0 %v121
    %157 = vmatprep.subr.mxu0 0.0
    %158 = vmatpush1.msra.mxu0 %v122
    %159 = vmatprep.subr.mxu0 0.0
    %160 = vmatpush1.msra.mxu0 %v123
    %161 = vmatprep.subr.mxu0 0.0
    %162 = vmatpush1.msra.mxu0 %v124
    %163 = vmatprep.subr.mxu0 0.0
    %164 = vmatpush1.msra.mxu0 %v125
    %165 = vmatprep.subr.mxu0 0.0
    %166 = vmatpush1.msra.mxu0 0.0
    %167 = vmatprep.subr.mxu0 0.0
    %168 = vmatpush1.msra.mxu0 0.0
    %169 = vmatprep.subr.mxu0 0.0
    %170 = vmatpush1.msra.mxu0 0.0
    %171 = vmatprep.subr.mxu0 0.0
    %172 = vmatpush1.msra.mxu0 0.0
    %173 = vmatprep.subr.mxu0 0.0
    %174 = vmatpush1.msra.mxu0 0.0
    %175 = vmatprep.subr.mxu0 0.0
    %176 = vmatpush1.msra.mxu0 0.0
    %177 = vmatprep.subr.mxu0 0.0
    %178 = vmatpush1.msra.mxu0 0.0
    %179 = vmatprep.subr.mxu0 0.0
    %180 = vmatpush1.msra.mxu0 0.0
    %181 = vmatprep.subr.mxu0 0.0
    %182 = vmatpush1.msra.mxu0 0.0
    %183 = vmatprep.subr.mxu0 0.0
    %184 = vmatpush1.msra.mxu0 0.0
    %185 = vmatprep.subr.mxu0 0.0
    %186 = vmatpush1.msra.mxu0 0.0
    %187 = vmatprep.subr.mxu0 0.0
    %188 = vmatpush1.msra.mxu0 0.0
    %189 = vmatprep.subr.mxu0 0.0
    %190 = vmatpush1.msra.mxu0 0.0
    %191 = vmatprep.subr.mxu0 0.0
    %192 = vmatpush1.msra.mxu0 0.0
    %193 = vmatprep.subr.mxu0 0.0
    %194 = vmatpush1.msra.mxu0 0.0
    %195 = vmatprep.subr.mxu0 0.0
    %196 = vmatpush1.msra.mxu0 0.0
    %197 = vmatprep.mubr.f32.mxu0 0.0
    %198 = vmatmul.mubr.f32.gmra.mrb[0].mxu0 %v109
    %v199 = vpop.f32.mrb[0].mxu0
    %v200 = vadd.f32 %v131, %v199
    %v201 = vpop.f32.mrb[0].mxu0
    %202 = vdwg.mxu0
    %vm203 = vcmask 66560
    %204 = vst.msk [vmem:[#allocation2] sm:$0x3] %vm203, %v200
    // Predicated region
    $region22: #{dqn_forward.1} parent=1 // pred_check
      _
    $region23: #{dqn_forward.1} parent=1 // pred_check_branch
      %206 = sbr.rel (0) target = $region25
    $region24: #{dqn_forward.1} parent=1 // pred_region
      %s208 = ssub.s32 32, 32
      %209 = vsyncadd [#allocation3], %s208
      %s211 = sshll.u32 [#allocation2], 4
      %s212 = int_to_ptr.vmem [resolvable:$true] %s211
      %214 = dma.vmem_to_hbm [thread:$0]  %s212, 32, %s5, [#allocation3]
    $region25: #{dqn_forward.1} parent=1 // pred_fallthru
      _
    // Predicated region
    $region26: #{dqn_forward.1} parent=1 // pred_check
      _
    $region27: #{dqn_forward.1} parent=1 // pred_check_branch
      %216 = sbr.rel (0) target = $region29
    $region28: #{dqn_forward.1} parent=1 // pred_region
      %217 = dma.done [#allocation3], 32
    $region29: #{dqn_forward.1} parent=1 // pred_fallthru
      _
    %218 = vsyncpa [#allocation3], 1

</llo_original>
